<compile_context>
chip_gen: v7x
topology: tpu7x:2x2x1
jax: 0.10.0
libtpu: 0.0.40
codegen_flags: <defaults>
</compile_context>

<pallas_src>
import jax
import jax.numpy as jnp
from jax.experimental import pallas as pl
from jax.experimental.pallas import tpu as pltpu

BN_EPS = 1e-5


def _round_up(n, m):
    return ((n + m - 1) // m) * m


def _cdiv(a, b):
    return -(-a // b)


# ----------------------------------------------------------------------------------
# two-pass fallback kernels (used only when the fused h scratch would not fit VMEM)
# ----------------------------------------------------------------------------------
def _stats_kernel(x_ref, w2t_ref, h_ref, stats_ref):
    # x_ref: (TB, D_pad) bf16, w2t_ref: (D_pad, W_pad) bf16 (resident)
    # h_ref: (TB, W_pad) f32,  stats_ref: (2, W_pad) f32 accumulator (row0=sum, row1=sumsq)
    @pl.when(pl.program_id(0) == 0)
    def _():
        stats_ref[...] = jnp.zeros_like(stats_ref)

    h = jnp.dot(x_ref[...], w2t_ref[...], preferred_element_type=jnp.float32)
    h_ref[...] = h
    stats_ref[0:1, :] = stats_ref[0:1, :] + jnp.sum(h, axis=0, keepdims=True)
    stats_ref[1:2, :] = stats_ref[1:2, :] + jnp.sum(h * h, axis=0, keepdims=True)


def _apply_kernel(h_ref, ss_ref, w1t_ref, b1_ref, out_ref):
    # h_ref: (TB, W_pad) f32, ss_ref: (2, W_pad) f32 (row0=scale, row1=shift)
    # w1t_ref: (W_pad, O_pad) bf16 (resident), b1_ref: (1, O_pad) f32, out_ref: (TB, O_pad) f32
    a = jnp.maximum(h_ref[...] * ss_ref[0:1, :] + ss_ref[1:2, :], 0.0)
    out_ref[...] = (
        jnp.dot(a.astype(w1t_ref.dtype), w1t_ref[...], preferred_element_type=jnp.float32)
        + b1_ref[...]
    )


# ----------------------------------------------------------------------------------
# one-time parameter preparation (hoisted out of the per-call path)
# ----------------------------------------------------------------------------------
def prepare_params(params, input_size):
    """Transpose, zero-pad (lane-dense) and cast the weights once."""
    w2, gamma, beta, w1, b1 = (
        params["w2"], params["gamma"], params["beta"], params["w1"], params["b1"],
    )
    # params["b2"] is deliberately unused: a per-feature bias before training-mode
    # BatchNorm is exactly cancelled by the batch-mean subtraction.
    W, D = w2.shape
    assert D == input_size
    O = w1.shape[0]
    D_pad, W_pad, O_pad = _round_up(D, 128), _round_up(W, 128), _round_up(O, 128)
    f32, bf16 = jnp.float32, jnp.bfloat16

    w2t = jnp.zeros((D_pad, W_pad), bf16).at[:D, :W].set(w2.T.astype(bf16))
    w1t = jnp.zeros((W_pad, O_pad), bf16).at[:W, :O].set(w1.T.astype(bf16))
    # gamma padded with 0 so padded hidden units stay exactly 0 through BN + ReLU.
    gb = (
        jnp.zeros((2, W_pad), f32)
        .at[0, :W].set(gamma.astype(f32))
        .at[1, :W].set(beta.astype(f32))
    )
    b1p = jnp.zeros((1, O_pad), f32).at[0, :O].set(b1.astype(f32))
    return {
        "w2t": w2t, "w1t": w1t, "gb": gb, "b1": b1p,
        "D": D, "W": W, "O": O, "D_pad": D_pad, "W_pad": W_pad, "O_pad": O_pad,
    }


# ----------------------------------------------------------------------------------
# forward
# ----------------------------------------------------------------------------------
def fc2_forward(x_nchw, prep, *, max_batch_tile=512, force_two_pass=False):
    """FC2 forward (training-mode BatchNorm). x_nchw: (B, C, H, W) float32."""
    f32, bf16 = jnp.float32, jnp.bfloat16
    B = x_nchw.shape[0]
    x_flat = x_nchw.reshape(B, -1)                      # nn.Flatten equivalent
    D, O = prep["D"], prep["O"]
    D_pad, W_pad, O_pad = prep["D_pad"], prep["W_pad"], prep["O_pad"]
    assert x_flat.shape[1] == D

    # Adaptive batch tiling: pad only to the bf16 sublane multiple (16), not a fixed tile.
    NB = _cdiv(B, max_batch_tile)
    TB = _round_up(_cdiv(B, NB), 16)
    B_pad = NB * TB

    if (B_pad, D_pad) == (B, D):
        x_pad = x_flat.astype(bf16)                     # skip the zero-pad materialization
    else:
        x_pad = jnp.zeros((B_pad, D_pad), bf16).at[:B, :D].set(x_flat.astype(bf16))

    inv_b = 1.0 / B                                     # padded rows are 0 -> exact stats

    # ---- VMEM budgeting (bytes): every BlockSpec operand is double-buffered -------------
    w2t_b, w1t_b = D_pad * W_pad * 2, W_pad * O_pad * 2
    gb_b, b1_b = 8 * W_pad * 4, 8 * O_pad * 4           # sublane-padded
    x_tile_b, out_tile_b = TB * D_pad * 2, TB * O_pad * 4
    h_scr_b = B_pad * W_pad * 4
    small_scr_b = 2 * (8 * W_pad * 4)                   # stats + scale/shift scratch
    fused_need = 2 * (w2t_b + w1t_b + gb_b + b1_b + x_tile_b + out_tile_b) + h_scr_b + small_scr_b
    FUSED_VMEM_BUDGET = 40 << 20                        # stay well under v7x's 64 MiB physical

    def _vmem_limit(need):
        return int(min(max(need * 1.25 + (2 << 20), 32 << 20), 56 << 20))

    use_fused = (not force_two_pass) and fused_need <= FUSED_VMEM_BUDGET

    # ================= fused single-kernel path (no HBM round-trip for h) ================
    if use_fused:
        nb_last = NB - 1

        def fused_kernel(x_ref, w2t_ref, w1t_ref, gb_ref, b1_ref, out_ref,
                         h_scr, stats_scr, ss_scr):
            p = pl.program_id(0)          # 0: matmul+stats sweep, 1: BN+ReLU+matmul sweep
            i = pl.program_id(1)          # batch tile

            @pl.when(p == 0)
            def _pass1():
                @pl.when(i == 0)
                def _():
                    stats_scr[...] = jnp.zeros_like(stats_scr)

                h = jnp.dot(x_ref[...], w2t_ref[...], preferred_element_type=jnp.float32)
                row = pl.multiple_of(i * TB, 8)
                h_scr[pl.ds(row, TB), :] = h
                stats_scr[0:1, :] = stats_scr[0:1, :] + jnp.sum(h, axis=0, keepdims=True)
                stats_scr[1:2, :] = stats_scr[1:2, :] + jnp.sum(h * h, axis=0, keepdims=True)

            # Fold training-mode BN (+gamma/beta) into one per-feature scale/shift, once.
            @pl.when((p == 1) & (i == 0))
            def _fold_bn():
                mean = stats_scr[0:1, :] * inv_b
                var = jnp.maximum(stats_scr[1:2, :] * inv_b - mean * mean, 0.0)
                scale = gb_ref[0:1, :] * jax.lax.rsqrt(var + BN_EPS)
                ss_scr[0:1, :] = scale
                ss_scr[1:2, :] = gb_ref[1:2, :] - mean * scale

            @pl.when(p == 1)
            def _pass2():
                row = pl.multiple_of(i * TB, 8)
                h = h_scr[pl.ds(row, TB), :]
                a = jnp.maximum(h * ss_scr[0:1, :] + ss_scr[1:2, :], 0.0)
                out_ref[...] = (
                    jnp.dot(a.astype(jnp.bfloat16), w1t_ref[...],
                            preferred_element_type=jnp.float32)
                    + b1_ref[...]
                )

        out_pad = pl.pallas_call(
            fused_kernel,
            out_shape=jax.ShapeDtypeStruct((B_pad, O_pad), f32),
            grid_spec=pltpu.PrefetchScalarGridSpec(
                num_scalar_prefetch=0,
                grid=(2, NB),
                in_specs=[
                    # x: real batch tiles in phase 0; pinned to the last tile in phase 1
                    # so no x DMA is re-issued during the second sweep.
                    pl.BlockSpec((TB, D_pad), lambda p, i: (i * (1 - p) + nb_last * p, 0)),
                    pl.BlockSpec((D_pad, W_pad), lambda p, i: (0, 0)),   # W2^T resident
                    pl.BlockSpec((W_pad, O_pad), lambda p, i: (0, 0)),   # W1^T resident
                    pl.BlockSpec((2, W_pad), lambda p, i: (0, 0)),       # gamma/beta resident
                    pl.BlockSpec((1, O_pad), lambda p, i: (0, 0)),       # b1 resident
                ],
                # phase 0 parks the output on block 0 (never written); phase 1 writes tile i.
                out_specs=pl.BlockSpec((TB, O_pad), lambda p, i: (i * p, 0)),
                scratch_shapes=[
                    pltpu.VMEM((B_pad, W_pad), f32),   # persistent h (stays on-chip)
                    pltpu.VMEM((2, W_pad), f32),       # sum / sumsq accumulator
                    pltpu.VMEM((2, W_pad), f32),       # folded BN scale / shift
                ],
            ),
            compiler_params=pltpu.CompilerParams(
                # phase axis is sequential; batch axis must also be sequential because the
                # h/stats scratch is shared across batch tiles (single-core ownership).
                dimension_semantics=("arbitrary", "arbitrary"),
                vmem_limit_bytes=_vmem_limit(fused_need),
            ),
        )(x_pad, prep["w2t"], prep["w1t"], prep["gb"], prep["b1"])
        return out_pad[:B, :O]

    # ================= two-pass fallback (h round-trips through HBM in f32) ==============
    pass1_need = 2 * (w2t_b + x_tile_b + TB * W_pad * 4 + 8 * W_pad * 4)
    pass2_need = 2 * (TB * W_pad * 4 + 8 * W_pad * 4 + w1t_b + b1_b + out_tile_b)

    h, stats = pl.pallas_call(
        _stats_kernel,
        out_shape=(
            jax.ShapeDtypeStruct((B_pad, W_pad), f32),
            jax.ShapeDtypeStruct((2, W_pad), f32),
        ),
        grid_spec=pltpu.PrefetchScalarGridSpec(
            num_scalar_prefetch=0,
            grid=(NB,),
            in_specs=[
                pl.BlockSpec((TB, D_pad), lambda i: (i, 0)),
                pl.BlockSpec((D_pad, W_pad), lambda i: (0, 0)),
            ],
            out_specs=[
                pl.BlockSpec((TB, W_pad), lambda i: (i, 0)),
                pl.BlockSpec((2, W_pad), lambda i: (0, 0)),      # resident accumulator
            ],
        ),
        compiler_params=pltpu.CompilerParams(
            dimension_semantics=("arbitrary",),
            vmem_limit_bytes=_vmem_limit(pass1_need),
        ),
    )(x_pad, prep["w2t"])

    # O(W_pad) glue: fold BN into scale/shift (exact full-batch, biased variance).
    mean = stats[0] * inv_b
    var = jnp.maximum(stats[1] * inv_b - mean * mean, 0.0)
    scale = prep["gb"][0] * jax.lax.rsqrt(var + BN_EPS)
    shift = prep["gb"][1] - mean * scale
    ss = jnp.stack([scale, shift], axis=0)

    out_pad = pl.pallas_call(
        _apply_kernel,
        out_shape=jax.ShapeDtypeStruct((B_pad, O_pad), f32),
        grid_spec=pltpu.PrefetchScalarGridSpec(
            num_scalar_prefetch=0,
            grid=(NB,),
            in_specs=[
                pl.BlockSpec((TB, W_pad), lambda i: (i, 0)),
                pl.BlockSpec((2, W_pad), lambda i: (0, 0)),
                pl.BlockSpec((W_pad, O_pad), lambda i: (0, 0)),
                pl.BlockSpec((1, O_pad), lambda i: (0, 0)),
            ],
            out_specs=pl.BlockSpec((TB, O_pad), lambda i: (i, 0)),
        ),
        compiler_params=pltpu.CompilerParams(
            dimension_semantics=("parallel",),           # independent batch tiles
            vmem_limit_bytes=_vmem_limit(pass2_need),
        ),
    )(h, ss, prep["w1t"], prep["b1"])
    return out_pad[:B, :O]


# ----------------------------------------------------------------------------------
# parameters + references
# ----------------------------------------------------------------------------------
def init_params(key, input_size, width, num_classes=10):
    """Deterministic synthetic params matching FC2.__init__ shapes."""
    k1, k2, k3, k4 = jax.random.split(key, 4)
    w2 = jax.random.normal(k1, (width, input_size), jnp.float32) * 0.02   # linear_2.weight
    b2 = jax.random.normal(k2, (width,), jnp.float32) * 0.01              # linear_2.bias
    gamma = jnp.ones((width,), jnp.float32)                               # bn_1.weight
    beta = jnp.zeros((width,), jnp.float32)                               # bn_1.bias
    w1 = jax.random.normal(k3, (num_classes, width), jnp.float32) * 0.05  # linear_1.weight
    b1 = jax.random.normal(k4, (num_classes,), jnp.float32) * 0.01        # linear_1.bias
    return {"w2": w2, "b2": b2, "gamma": gamma, "beta": beta, "w1": w1, "b1": b1}


def _policy_reference(x, params):
    """Pure-JAX reference using the same precision policy as the kernel
    (bf16 MXU operands, f32 accumulation, f32 BN/ReLU; b2 cancelled by BN)."""
    B = x.shape[0]
    bf16, f32 = jnp.bfloat16, jnp.float32
    xf = x.reshape(B, -1).astype(f32)
    h = jnp.dot(xf.astype(bf16), params["w2"].T.astype(bf16), preferred_element_type=f32)
    mu = jnp.mean(h, axis=0, keepdims=True)
    var = jnp.maximum(jnp.mean(h * h, axis=0, keepdims=True) - mu * mu, 0.0)
    scale = params["gamma"] * jax.lax.rsqrt(var + BN_EPS)
    shift = params["beta"] - mu * scale
    a = jnp.maximum(h * scale + shift, 0.0)
    return jnp.dot(a.astype(bf16), params["w1"].T.astype(bf16),
                   preferred_element_type=f32) + params["b1"]


def _f32_reference(x, params):
    """Full-f32 reference including b2 (demonstrates that training-mode BN cancels it)."""
    B = x.shape[0]
    xf = x.reshape(B, -1)
    h = xf @ params["w2"].T + params["b2"]
    mu = jnp.mean(h, axis=0, keepdims=True)
    var = jnp.mean((h - mu) ** 2, axis=0, keepdims=True)
    a = jnp.maximum((h - mu) / jnp.sqrt(var + BN_EPS) * params["gamma"] + params["beta"], 0.0)
    return a @ params["w1"].T + params["b1"]


if __name__ == "__main__":
    key = jax.random.PRNGKey(0)
    kx, kp, kx2 = jax.random.split(key, 3)

    # Small shapes consistent with the module (NCHW input, args.width hidden units).
    B, C, H, Wsp = 8, 3, 8, 8            # input_size = 3*8*8 = 192 (pads to 256 lanes)
    WIDTH = 32                            # args.width (pads to 128 lanes)
    input_size = C * H * Wsp

    x = jax.random.normal(kx, (B, C, H, Wsp), jnp.float32)
    params = init_params(kp, input_size, WIDTH)
    prep = prepare_params(params, input_size)

    # fused single-kernel path (default) and the two-pass fallback path
    out_fused = jax.block_until_ready(fc2_forward(x, prep))
    out_2pass = jax.block_until_ready(fc2_forward(x, prep, force_two_pass=True))

    ref_policy = _policy_reference(x, params)
    ref_f32 = _f32_reference(x, params)

    assert out_fused.shape == (B, 10)
    assert jnp.allclose(out_fused, ref_policy, atol=1e-3, rtol=1e-3), "fused vs policy ref"
    assert jnp.allclose(out_2pass, ref_policy, atol=1e-3, rtol=1e-3), "two-pass vs policy ref"
    assert jnp.allclose(out_fused, ref_f32, atol=5e-2), "fused vs f32 ref (incl. b2)"

    # Multi-tile exercise: odd batch -> 3 batch tiles with a padded last tile.
    B2 = 40
    x2 = jax.random.normal(kx2, (B2, C, H, Wsp), jnp.float32)
    ref2 = _policy_reference(x2, params)
    out2_fused = jax.block_until_ready(fc2_forward(x2, prep, max_batch_tile=16))
    out2_2pass = jax.block_until_ready(
        fc2_forward(x2, prep, max_batch_tile=16, force_two_pass=True))
    assert out2_fused.shape == (B2, 10)
    assert jnp.allclose(out2_fused, ref2, atol=1e-3, rtol=1e-3), "multi-tile fused"
    assert jnp.allclose(out2_2pass, ref2, atol=1e-3, rtol=1e-3), "multi-tile two-pass"

    print("KERNEL_OK")
</pallas_src>

<mosaic_0001>
module attributes {stable_mosaic.version = 11 : i64} {
  func.func @fused_kernel(%arg0: i32, %arg1: i32, %arg2: memref<16x256xbf16, #tpu.memory_space<vmem>>, %arg3: memref<256x128xbf16, #tpu.memory_space<vmem>>, %arg4: memref<128x128xbf16, #tpu.memory_space<vmem>>, %arg5: memref<2x128xf32, #tpu.memory_space<vmem>>, %arg6: memref<1x128xf32, #tpu.memory_space<vmem>>, %arg7: memref<16x128xf32, #tpu.memory_space<vmem>>, %arg8: memref<16x128xf32, #tpu.memory_space<vmem>>, %arg9: memref<2x128xf32, #tpu.memory_space<vmem>>, %arg10: memref<2x128xf32, #tpu.memory_space<vmem>>) attributes {dimension_semantics = [#tpu.dimension_semantics<arbitrary>, #tpu.dimension_semantics<arbitrary>], iteration_bounds = array<i64: 2, 1>, scalar_prefetch = 0 : i64, scratch_operands = 3 : i64, tpu.core_type = #tpu.core_type<tc>, window_params = [{transform_indices = @transform_0, window_bounds = array<i64: 16, 256>}, {pipeline_mode = #tpu.pipeline_mode<synchronous>, transform_indices = @transform_1, window_bounds = array<i64: 256, 128>}, {pipeline_mode = #tpu.pipeline_mode<synchronous>, transform_indices = @transform_2, window_bounds = array<i64: 128, 128>}, {pipeline_mode = #tpu.pipeline_mode<synchronous>, transform_indices = @transform_3, window_bounds = array<i64: 2, 128>}, {pipeline_mode = #tpu.pipeline_mode<synchronous>, transform_indices = @transform_4, window_bounds = array<i64: 1, 128>}, {transform_indices = @transform_5, window_bounds = array<i64: 16, 128>}]} {
    %c0_i32 = arith.constant 0 : i32
    %0 = arith.cmpi eq, %arg0, %c0_i32 : i32
    %1 = arith.extui %0 : i1 to i32
    %c0_i32_0 = arith.constant 0 : i32
    %2 = arith.cmpi ne, %1, %c0_i32_0 : i32
    scf.if %2 {
      %c0_i32_5 = arith.constant 0 : i32
      %11 = arith.cmpi eq, %arg1, %c0_i32_5 : i32
      %12 = arith.extui %11 : i1 to i32
      %c0_i32_6 = arith.constant 0 : i32
      %13 = arith.cmpi ne, %12, %c0_i32_6 : i32
      scf.if %13 {
        %cst_20 = arith.constant 0.000000e+00 : f32
        %32 = vector.broadcast %cst_20 : f32 to vector<2x128xf32>
        %c0_21 = arith.constant 0 : index
        %c0_22 = arith.constant 0 : index
        %33 = vector.load %arg9[%c0_21, %c0_22] : memref<2x128xf32, #tpu.memory_space<vmem>>, vector<2x128xf32>
        tpu.vector_store %arg9[%c0_21, %c0_22], %32 {strides = array<i32>} : memref<2x128xf32, #tpu.memory_space<vmem>>, vector<2x128xf32>,
      } else {
      }
      %c0 = arith.constant 0 : index
      %c0_7 = arith.constant 0 : index
      %14 = vector.load %arg2[%c0, %c0_7] : memref<16x256xbf16, #tpu.memory_space<vmem>>, vector<16x256xbf16>
      %c0_8 = arith.constant 0 : index
      %c0_9 = arith.constant 0 : index
      %15 = vector.load %arg3[%c0_8, %c0_9] : memref<256x128xbf16, #tpu.memory_space<vmem>>, vector<256x128xbf16>
      %cst = arith.constant dense<0.000000e+00> : vector<16x128xf32>
      %16 = tpu.matmul %14, %15, %cst {dimension_numbers = #tpu.dot_dimension_numbers<[1], [0], [0], [1], [0, 0, 1, 1], [], []>} : vector<16x256xbf16>, vector<256x128xbf16>, vector<16x128xf32> -> vector<16x128xf32>
      %c16_i32 = arith.constant 16 : i32
      %17 = arith.muli %arg1, %c16_i32 : i32
      %18 = tpu.assume_multiple %17, 8 : i32
      %19 = arith.index_cast %18 : i32 to index
      %c0_10 = arith.constant 0 : index
      %20 = vector.load %arg8[%19, %c0_10] : memref<16x128xf32, #tpu.memory_space<vmem>>, vector<16x128xf32>
      tpu.vector_store %arg8[%19, %c0_10], %16 {strides = array<i32>} : memref<16x128xf32, #tpu.memory_space<vmem>>, vector<16x128xf32>,
      %c0_11 = arith.constant 0 : index
      %c0_12 = arith.constant 0 : index
      %21 = vector.load %arg9[%c0_11, %c0_12] : memref<2x128xf32, #tpu.memory_space<vmem>>, vector<1x128xf32>
      %cst_13 = arith.constant dense<0.000000e+00> : vector<128xf32>
      %22 = vector.multi_reduction <add>, %16, %cst_13 [0] : vector<16x128xf32> to vector<128xf32>
      %23 = vector.shape_cast %22 : vector<128xf32> to vector<1x128xf32>
      %24 = arith.addf %21, %23 : vector<1x128xf32>
      %c0_14 = arith.constant 0 : index
      %c0_15 = arith.constant 0 : index
      %25 = vector.load %arg9[%c0_14, %c0_15] : memref<2x128xf32, #tpu.memory_space<vmem>>, vector<1x128xf32>
      tpu.vector_store %arg9[%c0_14, %c0_15], %24 {strides = array<i32>} : memref<2x128xf32, #tpu.memory_space<vmem>>, vector<1x128xf32>,
      %c1 = arith.constant 1 : index
      %c0_16 = arith.constant 0 : index
      %26 = vector.load %arg9[%c1, %c0_16] : memref<2x128xf32, #tpu.memory_space<vmem>>, vector<1x128xf32>
      %27 = arith.mulf %16, %16 : vector<16x128xf32>
      %cst_17 = arith.constant dense<0.000000e+00> : vector<128xf32>
      %28 = vector.multi_reduction <add>, %27, %cst_17 [0] : vector<16x128xf32> to vector<128xf32>
      %29 = vector.shape_cast %28 : vector<128xf32> to vector<1x128xf32>
      %30 = arith.addf %26, %29 : vector<1x128xf32>
      %c1_18 = arith.constant 1 : index
      %c0_19 = arith.constant 0 : index
      %31 = vector.load %arg9[%c1_18, %c0_19] : memref<2x128xf32, #tpu.memory_space<vmem>>, vector<1x128xf32>
      tpu.vector_store %arg9[%c1_18, %c0_19], %30 {strides = array<i32>} : memref<2x128xf32, #tpu.memory_space<vmem>>, vector<1x128xf32>,
    } else {
    }
    %c1_i32 = arith.constant 1 : i32
    %3 = arith.cmpi eq, %arg0, %c1_i32 : i32
    %c0_i32_1 = arith.constant 0 : i32
    %4 = arith.cmpi eq, %arg1, %c0_i32_1 : i32
    %5 = arith.andi %3, %4 : i1
    %6 = arith.extui %5 : i1 to i32
    %c0_i32_2 = arith.constant 0 : i32
    %7 = arith.cmpi ne, %6, %c0_i32_2 : i32
    scf.if %7 {
      %c0 = arith.constant 0 : index
      %c0_5 = arith.constant 0 : index
      %11 = vector.load %arg9[%c0, %c0_5] : memref<2x128xf32, #tpu.memory_space<vmem>>, vector<1x128xf32>
      %cst = arith.constant 1.250000e-01 : f32
      %12 = vector.broadcast %cst : f32 to vector<1x128xf32>
      %13 = arith.mulf %11, %12 : vector<1x128xf32>
      %c1 = arith.constant 1 : index
      %c0_6 = arith.constant 0 : index
      %14 = vector.load %arg9[%c1, %c0_6] : memref<2x128xf32, #tpu.memory_space<vmem>>, vector<1x128xf32>
      %cst_7 = arith.constant 1.250000e-01 : f32
      %15 = vector.broadcast %cst_7 : f32 to vector<1x128xf32>
      %16 = arith.mulf %14, %15 : vector<1x128xf32>
      %17 = arith.mulf %13, %13 : vector<1x128xf32>
      %18 = arith.subf %16, %17 : vector<1x128xf32>
      %cst_8 = arith.constant 0.000000e+00 : f32
      %19 = vector.broadcast %cst_8 : f32 to vector<1x128xf32>
      %20 = arith.maximumf %18, %19 : vector<1x128xf32>
      %c0_9 = arith.constant 0 : index
      %c0_10 = arith.constant 0 : index
      %21 = vector.load %arg5[%c0_9, %c0_10] : memref<2x128xf32, #tpu.memory_space<vmem>>, vector<1x128xf32>
      %cst_11 = arith.constant 9.99999974E-6 : f32
      %22 = vector.broadcast %cst_11 : f32 to vector<1x128xf32>
      %23 = arith.addf %20, %22 : vector<1x128xf32>
      %24 = math.rsqrt %23 : vector<1x128xf32>
      %25 = arith.mulf %21, %24 : vector<1x128xf32>
      %c0_12 = arith.constant 0 : index
      %c0_13 = arith.constant 0 : index
      %26 = vector.load %arg10[%c0_12, %c0_13] : memref<2x128xf32, #tpu.memory_space<vmem>>, vector<1x128xf32>
      tpu.vector_store %arg10[%c0_12, %c0_13], %25 {strides = array<i32>} : memref<2x128xf32, #tpu.memory_space<vmem>>, vector<1x128xf32>,
      %c1_14 = arith.constant 1 : index
      %c0_15 = arith.constant 0 : index
      %27 = vector.load %arg5[%c1_14, %c0_15] : memref<2x128xf32, #tpu.memory_space<vmem>>, vector<1x128xf32>
      %28 = arith.mulf %13, %25 : vector<1x128xf32>
      %29 = arith.subf %27, %28 : vector<1x128xf32>
      %c1_16 = arith.constant 1 : index
      %c0_17 = arith.constant 0 : index
      %30 = vector.load %arg10[%c1_16, %c0_17] : memref<2x128xf32, #tpu.memory_space<vmem>>, vector<1x128xf32>
      tpu.vector_store %arg10[%c1_16, %c0_17], %29 {strides = array<i32>} : memref<2x128xf32, #tpu.memory_space<vmem>>, vector<1x128xf32>,
    } else {
    }
    %c1_i32_3 = arith.constant 1 : i32
    %8 = arith.cmpi eq, %arg0, %c1_i32_3 : i32
    %9 = arith.extui %8 : i1 to i32
    %c0_i32_4 = arith.constant 0 : i32
    %10 = arith.cmpi ne, %9, %c0_i32_4 : i32
    scf.if %10 {
      %c16_i32 = arith.constant 16 : i32
      %11 = arith.muli %arg1, %c16_i32 : i32
      %12 = tpu.assume_multiple %11, 8 : i32
      %13 = arith.index_cast %12 : i32 to index
      %c0 = arith.constant 0 : index
      %14 = vector.load %arg8[%13, %c0] : memref<16x128xf32, #tpu.memory_space<vmem>>, vector<16x128xf32>
      %c0_5 = arith.constant 0 : index
      %c0_6 = arith.constant 0 : index
      %15 = vector.load %arg10[%c0_5, %c0_6] : memref<2x128xf32, #tpu.memory_space<vmem>>, vector<1x128xf32>
      %16 = vector.broadcast %15 : vector<1x128xf32> to vector<16x128xf32>
      %17 = arith.mulf %14, %16 : vector<16x128xf32>
      %c1 = arith.constant 1 : index
      %c0_7 = arith.constant 0 : index
      %18 = vector.load %arg10[%c1, %c0_7] : memref<2x128xf32, #tpu.memory_space<vmem>>, vector<1x128xf32>
      %19 = vector.broadcast %18 : vector<1x128xf32> to vector<16x128xf32>
      %20 = arith.addf %17, %19 : vector<16x128xf32>
      %cst = arith.constant 0.000000e+00 : f32
      %21 = vector.broadcast %cst : f32 to vector<16x128xf32>
      %22 = arith.maximumf %20, %21 : vector<16x128xf32>
      %23 = arith.truncf %22 : vector<16x128xf32> to vector<16x128xbf16>
      %c0_8 = arith.constant 0 : index
      %c0_9 = arith.constant 0 : index
      %24 = vector.load %arg4[%c0_8, %c0_9] : memref<128x128xbf16, #tpu.memory_space<vmem>>, vector<128x128xbf16>
      %cst_10 = arith.constant dense<0.000000e+00> : vector<16x128xf32>
      %25 = tpu.matmul %23, %24, %cst_10 {dimension_numbers = #tpu.dot_dimension_numbers<[1], [0], [0], [1], [0, 0, 1, 1], [], []>} : vector<16x128xbf16>, vector<128x128xbf16>, vector<16x128xf32> -> vector<16x128xf32>
      %c0_11 = arith.constant 0 : index
      %c0_12 = arith.constant 0 : index
      %26 = vector.load %arg6[%c0_11, %c0_12] : memref<1x128xf32, #tpu.memory_space<vmem>>, vector<1x128xf32>
      %27 = vector.broadcast %26 : vector<1x128xf32> to vector<16x128xf32>
      %28 = arith.addf %25, %27 : vector<16x128xf32>
      %c0_13 = arith.constant 0 : index
      %c0_14 = arith.constant 0 : index
      %29 = vector.load %arg7[%c0_13, %c0_14] : memref<16x128xf32, #tpu.memory_space<vmem>>, vector<16x128xf32>
      tpu.vector_store %arg7[%c0_13, %c0_14], %28 {strides = array<i32>} : memref<16x128xf32, #tpu.memory_space<vmem>>, vector<16x128xf32>,
    } else {
    }
    return
  }
  func.func @transform_0(%arg0: i32, %arg1: i32) -> (i32, i32) {
    %c1_i32 = arith.constant 1 : i32
    %0 = arith.subi %c1_i32, %arg0 : i32
    %1 = arith.muli %arg1, %0 : i32
    %c0_i32 = arith.constant 0 : i32
    %2 = arith.muli %c0_i32, %arg0 : i32
    %3 = arith.addi %1, %2 : i32
    %c0_i32_0 = arith.constant 0 : i32
    %c0_i32_1 = arith.constant 0 : i32
    return %3, %c0_i32_0 : i32, i32
  }
  func.func @transform_1(%arg0: i32, %arg1: i32) -> (i32, i32) {
    %c0_i32 = arith.constant 0 : i32
    %c0_i32_0 = arith.constant 0 : i32
    %c0_i32_1 = arith.constant 0 : i32
    return %c0_i32, %c0_i32_0 : i32, i32
  }
  func.func @transform_2(%arg0: i32, %arg1: i32) -> (i32, i32) {
    %c0_i32 = arith.constant 0 : i32
    %c0_i32_0 = arith.constant 0 : i32
    %c0_i32_1 = arith.constant 0 : i32
    return %c0_i32, %c0_i32_0 : i32, i32
  }
  func.func @transform_3(%arg0: i32, %arg1: i32) -> (i32, i32) {
    %c0_i32 = arith.constant 0 : i32
    %c0_i32_0 = arith.constant 0 : i32
    %c0_i32_1 = arith.constant 0 : i32
    return %c0_i32, %c0_i32_0 : i32, i32
  }
  func.func @transform_4(%arg0: i32, %arg1: i32) -> (i32, i32) {
    %c0_i32 = arith.constant 0 : i32
    %c0_i32_0 = arith.constant 0 : i32
    %c0_i32_1 = arith.constant 0 : i32
    return %c0_i32, %c0_i32_0 : i32, i32
  }
  func.func @transform_5(%arg0: i32, %arg1: i32) -> (i32, i32) {
    %0 = arith.muli %arg1, %arg0 : i32
    %c0_i32 = arith.constant 0 : i32
    %c0_i32_0 = arith.constant 0 : i32
    return %0, %c0_i32 : i32, i32
  }
}

</mosaic_0001>

<llo_original>
// kernel: tpu_custom_call.1
$region0: #{tpu_custom_call.1}
  #allocation0 [shape = 'u32[]', space=smem, size = 0x4, offset = 0x4, fixed_abs, tag = 'smem constant byte address 0x4 - core index']
  #allocation1 [shape = 'u32[144,128]{1,0:T(1,128)}', space=vmem, size = 0x12000, scoped, tag = 'internal scratch']
  #allocation2 [shape = 'f32[16,128]{1,0:T(8,128)}', space=vmem, size = 0x2000, scoped, tag = 'scratch operand']
  #allocation3 [shape = 'f32[2,128]{1,0:T(2,128)}', space=vmem, size = 0x400, scoped, tag = 'scratch operand']
  #allocation4 [shape = 'f32[2,128]{1,0:T(2,128)}', space=vmem, size = 0x400, scoped, tag = 'scratch operand']
  %s0 = inlined_call_operand.hbm [shape: bf16[16,256], index: 0, kind: input, shape index: {}]
  %s1 = inlined_call_operand.hbm [shape: bf16[256,128], index: 1, kind: input, shape index: {}]
  %s2 = inlined_call_operand.hbm [shape: bf16[128,128], index: 2, kind: input, shape index: {}]
  %s3 = inlined_call_operand.vmem [shape: f32[2,128], index: 3, kind: input, shape index: {}]
  %s4 = inlined_call_operand.vmem [shape: f32[1,128], index: 4, kind: input, shape index: {}]
  %s5 = inlined_call_operand.hbm [shape: f32[16,128], index: 5, kind: output, shape index: {}]
  %s6 = sld [smem:[#allocation0]]
  $region81: #{tpu_custom_call.1} parent=0
    _
  %s8 = ssub.s32 1, %s6
  %s9 = scalar_select 0, %s8, %s6
  $region1: #{tpu_custom_call.1} parent=0
    #allocation5 [shape = 'u8[16384]{0}', space=vmem, size = 0x4000, scoped, tag = 'input window, operand 0']
    #allocation6 [shape = 's32[2]{0}', space=sflag, size = 0x8, scoped, tag = 'scoped memory for tpu_custom_call.1']
    #allocation7 [shape = 's32[2]{0}', space=sflag, size = 0x8, scoped, tag = 'scoped memory for tpu_custom_call.1']
    #allocation8 [shape = 'u8[65536]{0}', space=vmem, size = 0x10000, scoped, tag = 'input window, operand 1, single buffered']
    #allocation9 [shape = 's32[1]{0}', space=sflag, size = 0x4, scoped, tag = 'scoped memory for tpu_custom_call.1']
    #allocation10 [shape = 'u8[32768]{0}', space=vmem, size = 0x8000, scoped, tag = 'input window, operand 2, single buffered']
    #allocation11 [shape = 'u8[16384]{0}', space=vmem, size = 0x4000, scoped, tag = 'output window, operand 0']
    %10 = vsyncpa [#allocation6], 0
    %s11 = scalar_lea.sflag [#allocation6], 1
    %12 = vsyncpa %s11, 0
    %13 = vsyncpa [#allocation9], 0
    %14 = vsyncpa [#allocation7], 0
    %s15 = scalar_lea.sflag [#allocation7], 1
    %16 = vsyncpa %s15, 0
    loop: start=0, step=1, limit=4
    $region2: #{tpu_custom_call.1} parent=1 // loop_pre_header
      _
    $region3: #{tpu_custom_call.1} parent=1 // loop_header
      %s18 = sphi 0, %s22
      %p19 = scmp.ge.s32.totalorder %s18, 4
      %s25 = sphi 0, %s37
      %s26 = sphi 0, %s33
      %s27 = sphi 0, %s25
      %s28 = sphi 0, %s26
      %s29 = sphi 0, %s27
      %s30 = sphi 0, %s28
      %s44 = sphi 0, %s46
      %s47 = sphi 0, %s44
      %s48 = sphi 0, %s47
      %s64 = sphi 0, %s48
      %s68 = sphi 0, %s68
      %s70 = sphi 0, %s68
      %s71 = sphi 0, %s70
      %s85 = sphi 0, %s71
      %s89 = sphi 0, %s89
      %s91 = sphi 0, %s89
      %s92 = sphi 0, %s91
      %s106 = sphi 0, %s92
      %s110 = sphi 0, %s110
      %s112 = sphi 0, %s110
      %s113 = sphi 0, %s112
      %s127 = sphi 0, %s113
      %s131 = sphi 0, %s131
      %s133 = sphi 0, %s131
      %s134 = sphi 0, %s133
      %s148 = sphi 0, %s134
      %s156 = sphi 0, %s158
      %s159 = sphi 0, %s156
      %s160 = sphi 0, %s159
      %s176 = sphi 0, %s160
    $region4: #{tpu_custom_call.1} parent=1 // loop_header_branch
      %21 = sbr.rel (%p19) target = $region8
    $region5: #{tpu_custom_call.1} parent=1 // loop_body
      %s23 = ssub.s32 %s18, 1
      %s24 = ssub.s32 %s18, 2
      %s31 = sadd.s32 1, %s26
      %p32 = scmp.ge.s32.totalorder %s31, 1
      %s33 = scalar_select %p32, 0, %s31
      %s34 = sadd.s32 1, %s25
      %s35 = scalar_select %p32, %s34, %s25
      %p36 = scmp.ge.s32.totalorder %s35, 2
      %s37 = scalar_select %p36, 0, %s35
      %s38 = ssub.s32 1, %s25
      %s39 = smul.u32 %s26, %s38
      %s40 = ssub.s32 1, %s37
      %s41 = smul.u32 %s33, %s40
      %s42 = ssub.s32 %s39, %s41
      %p43 = scmp.eq.s32.totalorder %s42, 0
      %s45 = sadd.s32 %s44, 1
      %s46 = scalar_select %p43, %s44, %s45
      %p49 = pneg %p43
      %p50 = scmp.eq.s32.totalorder %s18, 1
      %p51 = por %p49, %p50
      %p52 = scmp.ne.s32.totalorder %s44, %s47
      %p53 = scmp.eq.s32.totalorder %s18, 0
      %p54 = por %p52, %p53
      %p55 = scmp.ne.s32.totalorder %s44, %s47
      %p56 = scmp.eq.s32.totalorder %s23, 1
      %p57 = por %p55, %p56
      %p58 = scmp.ne.s32.totalorder %s47, %s48
      %p59 = scmp.eq.s32.totalorder %s23, 0
      %p60 = por %p58, %p59
      %p61 = scmp.ne.s32.totalorder %s47, %s48
      %p62 = scmp.eq.s32.totalorder %s24, 1
      %p63 = por %p61, %p62
      %p65 = scmp.ne.s32.totalorder %s48, %s64
      %p66 = scmp.eq.s32.totalorder %s24, 0
      %p67 = por %p65, %p66
      %s69 = sadd.s32 %s68, 1
      %p72 = scmp.eq.s32.totalorder %s18, 1
      %p73 = scmp.ne.s32.totalorder %s68, %s70
      %p74 = scmp.eq.s32.totalorder %s18, 0
      %p75 = por %p73, %p74
      %p76 = scmp.ne.s32.totalorder %s68, %s70
      %p77 = scmp.eq.s32.totalorder %s23, 1
      %p78 = por %p76, %p77
      %p79 = scmp.ne.s32.totalorder %s70, %s71
      %p80 = scmp.eq.s32.totalorder %s23, 0
      %p81 = por %p79, %p80
      %p82 = scmp.ne.s32.totalorder %s70, %s71
      %p83 = scmp.eq.s32.totalorder %s24, 1
      %p84 = por %p82, %p83
      %p86 = scmp.ne.s32.totalorder %s71, %s85
      %p87 = scmp.eq.s32.totalorder %s24, 0
      %p88 = por %p86, %p87
      %s90 = sadd.s32 %s89, 1
      %p93 = scmp.eq.s32.totalorder %s18, 1
      %p94 = scmp.ne.s32.totalorder %s89, %s91
      %p95 = scmp.eq.s32.totalorder %s18, 0
      %p96 = por %p94, %p95
      %p97 = scmp.ne.s32.totalorder %s89, %s91
      %p98 = scmp.eq.s32.totalorder %s23, 1
      %p99 = por %p97, %p98
      %p100 = scmp.ne.s32.totalorder %s91, %s92
      %p101 = scmp.eq.s32.totalorder %s23, 0
      %p102 = por %p100, %p101
      %p103 = scmp.ne.s32.totalorder %s91, %s92
      %p104 = scmp.eq.s32.totalorder %s24, 1
      %p105 = por %p103, %p104
      %p107 = scmp.ne.s32.totalorder %s92, %s106
      %p108 = scmp.eq.s32.totalorder %s24, 0
      %p109 = por %p107, %p108
      %s111 = sadd.s32 %s110, 1
      %p114 = scmp.eq.s32.totalorder %s18, 1
      %p115 = scmp.ne.s32.totalorder %s110, %s112
      %p116 = scmp.eq.s32.totalorder %s18, 0
      %p117 = por %p115, %p116
      %p118 = scmp.ne.s32.totalorder %s110, %s112
      %p119 = scmp.eq.s32.totalorder %s23, 1
      %p120 = por %p118, %p119
      %p121 = scmp.ne.s32.totalorder %s112, %s113
      %p122 = scmp.eq.s32.totalorder %s23, 0
      %p123 = por %p121, %p122
      %p124 = scmp.ne.s32.totalorder %s112, %s113
      %p125 = scmp.eq.s32.totalorder %s24, 1
      %p126 = por %p124, %p125
      %p128 = scmp.ne.s32.totalorder %s113, %s127
      %p129 = scmp.eq.s32.totalorder %s24, 0
      %p130 = por %p128, %p129
      %s132 = sadd.s32 %s131, 1
      %p135 = scmp.eq.s32.totalorder %s18, 1
      %p136 = scmp.ne.s32.totalorder %s131, %s133
      %p137 = scmp.eq.s32.totalorder %s18, 0
      %p138 = por %p136, %p137
      %p139 = scmp.ne.s32.totalorder %s131, %s133
      %p140 = scmp.eq.s32.totalorder %s23, 1
      %p141 = por %p139, %p140
      %p142 = scmp.ne.s32.totalorder %s133, %s134
      %p143 = scmp.eq.s32.totalorder %s23, 0
      %p144 = por %p142, %p143
      %p145 = scmp.ne.s32.totalorder %s133, %s134
      %p146 = scmp.eq.s32.totalorder %s24, 1
      %p147 = por %p145, %p146
      %p149 = scmp.ne.s32.totalorder %s134, %s148
      %p150 = scmp.eq.s32.totalorder %s24, 0
      %p151 = por %p149, %p150
      %s152 = smul.u32 %s26, %s25
      %s153 = smul.u32 %s33, %s37
      %s154 = ssub.s32 %s152, %s153
      %p155 = scmp.eq.s32.totalorder %s154, 0
      %s157 = sadd.s32 %s156, 1
      %s158 = scalar_select %p155, %s156, %s157
      %p161 = pneg %p155
      %p162 = scmp.eq.s32.totalorder %s18, 1
      %p163 = por %p161, %p162
      %p164 = scmp.ne.s32.totalorder %s156, %s159
      %p165 = scmp.eq.s32.totalorder %s18, 0
      %p166 = por %p164, %p165
      %p167 = scmp.ne.s32.totalorder %s156, %s159
      %p168 = scmp.eq.s32.totalorder %s23, 1
      %p169 = por %p167, %p168
      %p170 = scmp.ne.s32.totalorder %s159, %s160
      %p171 = scmp.eq.s32.totalorder %s23, 0
      %p172 = por %p170, %p171
      %p173 = scmp.ne.s32.totalorder %s159, %s160
      %p174 = scmp.eq.s32.totalorder %s24, 1
      %p175 = por %p173, %p174
      %p177 = scmp.ne.s32.totalorder %s160, %s176
      %p178 = scmp.eq.s32.totalorder %s24, 0
      %p179 = por %p177, %p178
      %p180 = scmp.le.s32.totalorder 1, %s18
      %p181 = scmp.lt.s32.totalorder %s18, 3
      %p182 = pnand %p180, %p181
      %p183 = pneg %p182
      // Predicated region
      $region9: #{tpu_custom_call.1} parent=5 // pred_check
        _
      $region10: #{tpu_custom_call.1} parent=5 // pred_check_branch
        %185 = sbr.rel (%p182) target = $region12
      $region11: #{tpu_custom_call.1} parent=5 // pred_region
        %s186 = ssub.s32 %s18, 1
        // Predicated region
        $region13: #{tpu_custom_call.1} parent=11 // pred_check
          %p187 = pneg %p81
        $region14: #{tpu_custom_call.1} parent=11 // pred_check_branch
          %189 = sbr.rel (%p187) target = $region16
        $region15: #{tpu_custom_call.1} parent=11 // pred_region
          %s191 = ssub.s32 2048, 2048
          %192 = vsyncadd [#allocation9], %s191
          %s193 = sshll.u32 [#allocation8], 4
          %s194 = int_to_ptr.vmem [resolvable:$true] %s193
          %199 = dma.hbm_to_vmem [thread:$0]  %s1, 2048, %s194, [#allocation9], 64, 64, 4
        $region16: #{tpu_custom_call.1} parent=11 // pred_fallthru
          _
        // Predicated region
        $region17: #{tpu_custom_call.1} parent=11 // pred_check
          %p200 = pneg %p102
        $region18: #{tpu_custom_call.1} parent=11 // pred_check_branch
          %202 = sbr.rel (%p200) target = $region20
        $region19: #{tpu_custom_call.1} parent=11 // pred_region
          %s204 = ssub.s32 1024, 1024
          %205 = vsyncadd [#allocation9], %s204
          %s206 = sshll.u32 [#allocation10], 4
          %s207 = int_to_ptr.vmem [resolvable:$true] %s206
          %212 = dma.hbm_to_vmem [thread:$0]  %s2, 1024, %s207, [#allocation9], 64, 64, 4
        $region20: #{tpu_custom_call.1} parent=11 // pred_fallthru
          _
        // Predicated region
        $region21: #{tpu_custom_call.1} parent=11 // pred_check
          %p213 = pneg %p123
        $region22: #{tpu_custom_call.1} parent=11 // pred_check_branch
          %215 = sbr.rel (%p213) target = $region24
        $region23: #{tpu_custom_call.1} parent=11 // pred_region
          _
        $region24: #{tpu_custom_call.1} parent=11 // pred_fallthru
          _
        // Predicated region
        $region25: #{tpu_custom_call.1} parent=11 // pred_check
          %p216 = pneg %p144
        $region26: #{tpu_custom_call.1} parent=11 // pred_check_branch
          %218 = sbr.rel (%p216) target = $region28
        $region27: #{tpu_custom_call.1} parent=11 // pred_region
          _
        $region28: #{tpu_custom_call.1} parent=11 // pred_fallthru
          _
      $region12: #{tpu_custom_call.1} parent=5 // pred_fallthru
        _
      %p219 = scmp.lt.s32.totalorder %s18, 2
      // Predicated region
      $region29: #{tpu_custom_call.1} parent=5 // pred_check
        %p220 = pneg %p219
      $region30: #{tpu_custom_call.1} parent=5 // pred_check_branch
        %222 = sbr.rel (%p220) target = $region32
      $region31: #{tpu_custom_call.1} parent=5 // pred_region
        // Predicated region
        $region33: #{tpu_custom_call.1} parent=31 // pred_check
          %p223 = pneg %p54
        $region34: #{tpu_custom_call.1} parent=31 // pred_check_branch
          %225 = sbr.rel (%p223) target = $region36
        $region35: #{tpu_custom_call.1} parent=31 // pred_region
          %s226 = sand.u32 %s44, 1
          %s227 = scalar_lea.sflag [#allocation6], %s226
          %s228 = sand.u32 %s44, 1
          %s229 = smul.addr %s228, 16
          %s230 = scalar_lea.vmem [#allocation5], %s229
          %s231 = ssub.s32 1, %s25
          %s232 = smul.u32 %s26, %s231
          %s233 = smul.u32 2, %s232
          %s235 = ssub.s32 256, 256
          %236 = vsyncadd %s227, %s235
          %s237 = smul.addr %s233, 2
          %s238 = smul.addr %s237, 64
          %s239 = scalar_lea.hbm %s0, %s238
          %s240 = sshll.u32 %s230, 4
          %s241 = int_to_ptr.vmem [resolvable:$true] %s240
          %246 = dma.hbm_to_vmem [thread:$0]  %s239, 256, %s241, %s227, 128, 128, 8
        $region36: #{tpu_custom_call.1} parent=31 // pred_fallthru
          _
      $region32: #{tpu_custom_call.1} parent=5 // pred_fallthru
        _
      %p247 = scmp.le.s32.totalorder 1, %s18
      %p248 = scmp.lt.s32.totalorder %s18, 3
      %p249 = pnand %p247, %p248
      %p250 = pneg %p249
      // Predicated region
      $region37: #{tpu_custom_call.1} parent=5 // pred_check
        _
      $region38: #{tpu_custom_call.1} parent=5 // pred_check_branch
        %252 = sbr.rel (%p249) target = $region40
      $region39: #{tpu_custom_call.1} parent=5 // pred_region
        %s253 = ssub.s32 %s18, 1
        %s254 = sand.u32 %s47, 1
        %s255 = scalar_lea.sflag [#allocation6], %s254
        %s256 = sand.u32 %s47, 1
        %s257 = smul.addr %s256, 16
        %s258 = scalar_lea.vmem [#allocation5], %s257
        // Predicated region
        $region41: #{tpu_custom_call.1} parent=39 // pred_check
          %p259 = pneg %p60
        $region42: #{tpu_custom_call.1} parent=39 // pred_check_branch
          %261 = sbr.rel (%p259) target = $region44
        $region43: #{tpu_custom_call.1} parent=39 // pred_region
          %262 = dma.done %s255, 256
        $region44: #{tpu_custom_call.1} parent=39 // pred_fallthru
          _
        // Predicated region
        $region45: #{tpu_custom_call.1} parent=39 // pred_check
          %p263 = pneg %p81
        $region46: #{tpu_custom_call.1} parent=39 // pred_check_branch
          %265 = sbr.rel (%p263) target = $region48
        $region47: #{tpu_custom_call.1} parent=39 // pred_region
          %266 = dma.done [#allocation9], 2048
        $region48: #{tpu_custom_call.1} parent=39 // pred_fallthru
          _
        // Predicated region
        $region49: #{tpu_custom_call.1} parent=39 // pred_check
          %p267 = pneg %p102
        $region50: #{tpu_custom_call.1} parent=39 // pred_check_branch
          %269 = sbr.rel (%p267) target = $region52
        $region51: #{tpu_custom_call.1} parent=39 // pred_region
          %270 = dma.done [#allocation9], 1024
        $region52: #{tpu_custom_call.1} parent=39 // pred_fallthru
          _
        %s271 = sand.u32 %s47, 1
        %s272 = scalar_lea.sflag [#allocation6], %s271
        %s273 = sand.u32 %s47, 1
        %s274 = smul.addr %s273, 16
        %s275 = scalar_lea.vmem [#allocation5], %s274
        %p276 = pneg %p60
        %p277 = pneg %p57
        %p278 = pneg %p81
        %p279 = pneg %p78
        %p280 = pneg %p102
        %p281 = pneg %p99
        %p282 = pneg %p123
        %p283 = pneg %p120
        %p284 = pneg %p144
        %p285 = pneg %p141
        %p286 = pneg %p172
        %p287 = pneg %p169
        %s288 = sand.u32 %s159, 1
        %s289 = scalar_lea.sflag [#allocation7], %s288
        %s290 = sand.u32 %s159, 1
        %s291 = smul.addr %s290, 16
        %s292 = scalar_lea.vmem [#allocation11], %s291
        %s293 = ssub.s32 1, %s27
        %s294 = smul.u32 %s28, %s293
        %s295 = smul.u32 2, %s294
        %s296 = smul.u32 %s28, %s27
        %s297 = smul.u32 2, %s296
        %p299 = scmp.eq.s32.totalorder %s27, 0
        // Predicated region
        $region53: #{tpu_custom_call.1} parent=39 // pred_check
          %p300 = pneg %p299
        $region54: #{tpu_custom_call.1} parent=39 // pred_check_branch
          %302 = sbr.rel (%p300) target = $region56
        $region55: #{tpu_custom_call.1} parent=39 // pred_region
          %p303 = scmp.eq.s32.totalorder %s28, 0
          // Predicated region
          $region57: #{tpu_custom_call.1} parent=55 // pred_check
            %p304 = pneg %p303
          $region58: #{tpu_custom_call.1} parent=55 // pred_check_branch
            %306 = sbr.rel (%p304) target = $region60
          $region59: #{tpu_custom_call.1} parent=55 // pred_region
            %307 = vst [vmem:[#allocation3] sm:$0x3] 0.0
          $region60: #{tpu_custom_call.1} parent=55 // pred_fallthru
            _
          %v308 = vld [vmem:[%s258] sm:$0xff]
          %v309 = vld [vmem:[%s258 + $0x8] sm:$0xff]
          %v310 = vld [vmem:[#allocation8] sm:$0xf]
          %v311 = vld [vmem:[#allocation8 + $0x4] sm:$0xf]
          %v312 = vld [vmem:[#allocation8 + $0x8] sm:$0xf]
          %v313 = vld [vmem:[#allocation8 + $0xc] sm:$0xf]
          %v314 = vld [vmem:[#allocation8 + $0x10] sm:$0xf]
          %v315 = vld [vmem:[#allocation8 + $0x14] sm:$0xf]
          %v316 = vld [vmem:[#allocation8 + $0x18] sm:$0xf]
          %v317 = vld [vmem:[#allocation8 + $0x1c] sm:$0xf]
          %v318 = vld [vmem:[#allocation8 + $0x20] sm:$0xf]
          %v319 = vld [vmem:[#allocation8 + $0x24] sm:$0xf]
          %v320 = vld [vmem:[#allocation8 + $0x28] sm:$0xf]
          %v321 = vld [vmem:[#allocation8 + $0x2c] sm:$0xf]
          %v322 = vld [vmem:[#allocation8 + $0x30] sm:$0xf]
          %v323 = vld [vmem:[#allocation8 + $0x34] sm:$0xf]
          %v324 = vld [vmem:[#allocation8 + $0x38] sm:$0xf]
          %v325 = vld [vmem:[#allocation8 + $0x3c] sm:$0xf]
          %v326 = vld [vmem:[#allocation8 + $0x40] sm:$0xf]
          %v327 = vld [vmem:[#allocation8 + $0x44] sm:$0xf]
          %v328 = vld [vmem:[#allocation8 + $0x48] sm:$0xf]
          %v329 = vld [vmem:[#allocation8 + $0x4c] sm:$0xf]
          %v330 = vld [vmem:[#allocation8 + $0x50] sm:$0xf]
          %v331 = vld [vmem:[#allocation8 + $0x54] sm:$0xf]
          %v332 = vld [vmem:[#allocation8 + $0x58] sm:$0xf]
          %v333 = vld [vmem:[#allocation8 + $0x5c] sm:$0xf]
          %v334 = vld [vmem:[#allocation8 + $0x60] sm:$0xf]
          %v335 = vld [vmem:[#allocation8 + $0x64] sm:$0xf]
          %v336 = vld [vmem:[#allocation8 + $0x68] sm:$0xf]
          %v337 = vld [vmem:[#allocation8 + $0x6c] sm:$0xf]
          %v338 = vld [vmem:[#allocation8 + $0x70] sm:$0xf]
          %v339 = vld [vmem:[#allocation8 + $0x74] sm:$0xf]
          %v340 = vld [vmem:[#allocation8 + $0x78] sm:$0xf]
          %v341 = vld [vmem:[#allocation8 + $0x7c] sm:$0xf]
          %v344 = vunpack.c.l.b16 %v308
          %v345 = vunpack.c.h.b16 %v308
          %v346 = vunpack.c.l.b16 %v309
          %v347 = vunpack.c.h.b16 %v309
          %v348 = vpack.c.b16 %v346, %v344
          %v349 = vpack.c.b16 %v347, %v345
          %v384 = vunpack.c.l.b16 %v310
          %v385 = vunpack.c.l.b16 %v311
          %v386 = vunpack.c.l.b16 %v312
          %v387 = vunpack.c.l.b16 %v313
          %v388 = vunpack.c.l.b16 %v314
          %v389 = vunpack.c.l.b16 %v315
          %v390 = vunpack.c.l.b16 %v316
          %v391 = vunpack.c.l.b16 %v317
          %v392 = vunpack.c.l.b16 %v318
          %v393 = vunpack.c.l.b16 %v319
          %v394 = vunpack.c.l.b16 %v320
          %v395 = vunpack.c.l.b16 %v321
          %v396 = vunpack.c.l.b16 %v322
          %v397 = vunpack.c.l.b16 %v323
          %v398 = vunpack.c.l.b16 %v324
          %v399 = vunpack.c.l.b16 %v325
          %v400 = vunpack.c.l.b16 %v326
          %v401 = vunpack.c.l.b16 %v327
          %v402 = vunpack.c.l.b16 %v328
          %v403 = vunpack.c.l.b16 %v329
          %v404 = vunpack.c.l.b16 %v330
          %v405 = vunpack.c.l.b16 %v331
          %v406 = vunpack.c.l.b16 %v332
          %v407 = vunpack.c.l.b16 %v333
          %v408 = vunpack.c.l.b16 %v334
          %v409 = vunpack.c.l.b16 %v335
          %v410 = vunpack.c.l.b16 %v336
          %v411 = vunpack.c.l.b16 %v337
          %v412 = vunpack.c.l.b16 %v338
          %v413 = vunpack.c.l.b16 %v339
          %v414 = vunpack.c.l.b16 %v340
          %v415 = vunpack.c.l.b16 %v341
          %v416 = vpack.c.b16 %v385, %v384
          %v417 = vpack.c.b16 %v387, %v386
          %v418 = vpack.c.b16 %v389, %v388
          %v419 = vpack.c.b16 %v391, %v390
          %v420 = vpack.c.b16 %v393, %v392
          %v421 = vpack.c.b16 %v395, %v394
          %v422 = vpack.c.b16 %v397, %v396
          %v423 = vpack.c.b16 %v399, %v398
          %v424 = vpack.c.b16 %v401, %v400
          %v425 = vpack.c.b16 %v403, %v402
          %v426 = vpack.c.b16 %v405, %v404
          %v427 = vpack.c.b16 %v407, %v406
          %v428 = vpack.c.b16 %v409, %v408
          %v429 = vpack.c.b16 %v411, %v410
          %v430 = vpack.c.b16 %v413, %v412
          %v431 = vpack.c.b16 %v415, %v414
          %448 = vmatprep.subr.bf16.mxu0 0
          %449 = vmatpush1.bf16.msra.mxu0 %v416
          %450 = vmatprep.subr.bf16.mxu0 0
          %451 = vmatpush1.bf16.msra.mxu0 %v417
          %452 = vmatprep.subr.bf16.mxu0 0
          %453 = vmatpush1.bf16.msra.mxu0 %v418
          %454 = vmatprep.subr.bf16.mxu0 0
          %455 = vmatpush1.bf16.msra.mxu0 %v419
          %456 = vmatprep.subr.bf16.mxu0 0
          %457 = vmatpush1.bf16.msra.mxu0 %v420
          %458 = vmatprep.subr.bf16.mxu0 0
          %459 = vmatpush1.bf16.msra.mxu0 %v421
          %460 = vmatprep.subr.bf16.mxu0 0
          %461 = vmatpush1.bf16.msra.mxu0 %v422
          %462 = vmatprep.subr.bf16.mxu0 0
          %463 = vmatpush1.bf16.msra.mxu0 %v423
          %464 = vmatprep.subr.bf16.mxu0 0
          %465 = vmatpush1.bf16.msra.mxu0 %v424
          %466 = vmatprep.subr.bf16.mxu0 0
          %467 = vmatpush1.bf16.msra.mxu0 %v425
          %468 = vmatprep.subr.bf16.mxu0 0
          %469 = vmatpush1.bf16.msra.mxu0 %v426
          %470 = vmatprep.subr.bf16.mxu0 0
          %471 = vmatpush1.bf16.msra.mxu0 %v427
          %472 = vmatprep.subr.bf16.mxu0 0
          %473 = vmatpush1.bf16.msra.mxu0 %v428
          %474 = vmatprep.subr.bf16.mxu0 0
          %475 = vmatpush1.bf16.msra.mxu0 %v429
          %476 = vmatprep.subr.bf16.mxu0 0
          %477 = vmatpush1.bf16.msra.mxu0 %v430
          %478 = vmatprep.subr.bf16.mxu0 0
          %479 = vmatpush1.bf16.msra.mxu0 %v431
          %480 = vmatprep.mubr.bf16.mxu0 %v349
          %481 = vmatmul.mubr.bf16.gmra.mrb[0].mxu0 %v348
          %v482 = vpop.f32.mrb[0].mxu0
          %v483 = vadd.f32 0.0, %v482
          %v484 = vpop.f32.mrb[0].mxu0
          %v485 = vpop.f32.mrb[0].mxu0
          %v486 = vadd.f32 0.0, %v485
          %v487 = vpop.f32.mrb[0].mxu0
          %488 = vdwg.mxu0
          %s489 = smul.u32 %s28, 16
          %s490 = scalar_lea.vmem [#allocation2], %s489
          %491 = vst [vmem:[%s490] sm:$0xff] %v483
          %492 = vst [vmem:[%s490 + $0x8] sm:$0xff] %v486
          %v493 = vld [vmem:[#allocation3] sm:$0x1]
          %v494 = vadd.f32 %v483, %v486
          %v495 = vrot.slane %v494, 4
          %v496 = vadd.f32 %v494, %v495
          %v497 = vrot.slane %v496, 2
          %v498 = vadd.f32 %v496, %v497
          %v499 = vrot.slane %v498, 1
          %v500 = vadd.f32 %v498, %v499
          %v501 = vadd.f32 %v493, %v500
          %502 = vst [vmem:[#allocation3] sm:$0x1] %v501
          %v503 = vld [vmem:[#allocation3 + $0x1] sm:$0x1]
          %v504 = vmul.f32 %v483, %v483
          %v505 = vmul.f32 %v486, %v486
          %v506 = vadd.f32 %v504, %v505
          %v507 = vrot.slane %v506, 4
          %v508 = vadd.f32 %v506, %v507
          %v509 = vrot.slane %v508, 2
          %v510 = vadd.f32 %v508, %v509
          %v511 = vrot.slane %v510, 1
          %v512 = vadd.f32 %v510, %v511
          %v513 = vadd.f32 %v503, %v512
          %514 = vst [vmem:[#allocation3 + $0x1] sm:$0x1] %v513
        $region56: #{tpu_custom_call.1} parent=39 // pred_fallthru
          _
        %p515 = scmp.eq.s32.totalorder %s27, 1
        %p516 = scmp.eq.s32.totalorder %s28, 0
        %p517 = pnand %p515, %p516
        %p518 = pneg %p517
        // Predicated region
        $region61: #{tpu_custom_call.1} parent=39 // pred_check
          _
        $region62: #{tpu_custom_call.1} parent=39 // pred_check_branch
          %520 = sbr.rel (%p517) target = $region64
        $region63: #{tpu_custom_call.1} parent=39 // pred_region
          %v521 = vld [vmem:[#allocation3] sm:$0x1]
          %v522 = vmul.f32 %v521, 0.125
          %v523 = vld [vmem:[#allocation3 + $0x1] sm:$0x1]
          %v524 = vmul.f32 %v523, 0.125
          %v525 = vmul.f32 %v522, %v522
          %v526 = vsub.f32 %v524, %v525
          %v527 = vmax.f32 %v526, 0.0
          %v528 = vld [vmem:[%s3] sm:$0x1]
          %v529 = vadd.f32 %v527, 1e-05
          %v530 = vrsqrt.pop %v529
          %v531 = vmul.f32 %v528, %v530
          %532 = vst [vmem:[#allocation4] sm:$0x1] %v531
          %v533 = vld [vmem:[%s3 + $0x1] sm:$0x1]
          %v534 = vmul.f32 %v522, %v531
          %v535 = vsub.f32 %v533, %v534
          %536 = vst [vmem:[#allocation4 + $0x1] sm:$0x1] %v535
        $region64: #{tpu_custom_call.1} parent=39 // pred_fallthru
          _
        // Predicated region
        $region65: #{tpu_custom_call.1} parent=39 // pred_check
          %p537 = pneg %p515
        $region66: #{tpu_custom_call.1} parent=39 // pred_check_branch
          %539 = sbr.rel (%p537) target = $region68
        $region67: #{tpu_custom_call.1} parent=39 // pred_region
          %s540 = smul.u32 %s28, 16
          %s541 = scalar_lea.vmem [#allocation2], %s540
          %v542 = vld [vmem:[%s541] sm:$0xff]
          %v543 = vld [vmem:[%s541 + $0x8] sm:$0xff]
          %v544 = vld [vmem:[#allocation4] sm:$0x1]
          %v545 = vlaneseq
          %v546 = vshrl.u32 %v545, 7
          %v547 = vsub.s32 0, %v546
          %v548 = vrot.slane %v544, %v547
          %v549 = vmul.f32 %v542, %v548
          %v550 = vmul.f32 %v543, %v548
          %v551 = vld [vmem:[#allocation4 + $0x1] sm:$0x1]
          %v552 = vlaneseq
          %v553 = vshrl.u32 %v552, 7
          %v554 = vsub.s32 0, %v553
          %v555 = vrot.slane %v551, %v554
          %v556 = vadd.f32 %v549, %v555
          %v557 = vadd.f32 %v550, %v555
          %v558 = vmax.f32 %v556, 0.0
          %v559 = vmax.f32 %v557, 0.0
          %v560 = vpack.c.bf16 %v559, %v558
          %v561 = vld [vmem:[#allocation10] sm:$0xf]
          %v562 = vld [vmem:[#allocation10 + $0x4] sm:$0xf]
          %v563 = vld [vmem:[#allocation10 + $0x8] sm:$0xf]
          %v564 = vld [vmem:[#allocation10 + $0xc] sm:$0xf]
          %v565 = vld [vmem:[#allocation10 + $0x10] sm:$0xf]
          %v566 = vld [vmem:[#allocation10 + $0x14] sm:$0xf]
          %v567 = vld [vmem:[#allocation10 + $0x18] sm:$0xf]
          %v568 = vld [vmem:[#allocation10 + $0x1c] sm:$0xf]
          %v569 = vld [vmem:[#allocation10 + $0x20] sm:$0xf]
          %v570 = vld [vmem:[#allocation10 + $0x24] sm:$0xf]
          %v571 = vld [vmem:[#allocation10 + $0x28] sm:$0xf]
          %v572 = vld [vmem:[#allocation10 + $0x2c] sm:$0xf]
          %v573 = vld [vmem:[#allocation10 + $0x30] sm:$0xf]
          %v574 = vld [vmem:[#allocation10 + $0x34] sm:$0xf]
          %v575 = vld [vmem:[#allocation10 + $0x38] sm:$0xf]
          %v576 = vld [vmem:[#allocation10 + $0x3c] sm:$0xf]
          %v577 = vld [vmem:[%s4] sm:$0x1]
          %v579 = vlaneseq
          %v580 = vshrl.u32 %v579, 7
          %v581 = vsub.s32 0, %v580
          %v582 = vrot.slane %v577, %v581
          %v600 = vunpack.c.l.b16 %v561
          %v601 = vunpack.c.l.b16 %v562
          %v602 = vunpack.c.l.b16 %v563
          %v603 = vunpack.c.l.b16 %v564
          %v604 = vunpack.c.l.b16 %v565
          %v605 = vunpack.c.l.b16 %v566
          %v606 = vunpack.c.l.b16 %v567
          %v607 = vunpack.c.l.b16 %v568
          %v608 = vunpack.c.l.b16 %v569
          %v609 = vunpack.c.l.b16 %v570
          %v610 = vunpack.c.l.b16 %v571
          %v611 = vunpack.c.l.b16 %v572
          %v612 = vunpack.c.l.b16 %v573
          %v613 = vunpack.c.l.b16 %v574
          %v614 = vunpack.c.l.b16 %v575
          %v615 = vunpack.c.l.b16 %v576
          %v616 = vpack.c.b16 %v601, %v600
          %v617 = vpack.c.b16 %v603, %v602
          %v618 = vpack.c.b16 %v605, %v604
          %v619 = vpack.c.b16 %v607, %v606
          %v620 = vpack.c.b16 %v609, %v608
          %v621 = vpack.c.b16 %v611, %v610
          %v622 = vpack.c.b16 %v613, %v612
          %v623 = vpack.c.b16 %v615, %v614
          %632 = vmatprep.subr.bf16.mxu0 0
          %633 = vmatpush1.bf16.msra.mxu0 %v616
          %634 = vmatprep.subr.bf16.mxu0 0
          %635 = vmatpush1.bf16.msra.mxu0 %v617
          %636 = vmatprep.subr.bf16.mxu0 0
          %637 = vmatpush1.bf16.msra.mxu0 %v618
          %638 = vmatprep.subr.bf16.mxu0 0
          %639 = vmatpush1.bf16.msra.mxu0 %v619
          %640 = vmatprep.subr.bf16.mxu0 0
          %641 = vmatpush1.bf16.msra.mxu0 %v620
          %642 = vmatprep.subr.bf16.mxu0 0
          %643 = vmatpush1.bf16.msra.mxu0 %v621
          %644 = vmatprep.subr.bf16.mxu0 0
          %645 = vmatpush1.bf16.msra.mxu0 %v622
          %646 = vmatprep.subr.bf16.mxu0 0
          %647 = vmatpush1.bf16.msra.mxu0 %v623
          %648 = vmatprep.subr.bf16.mxu0 0
          %649 = vmatpush1.bf16.msra.mxu0 0
          %650 = vmatprep.subr.bf16.mxu0 0
          %651 = vmatpush1.bf16.msra.mxu0 0
          %652 = vmatprep.subr.bf16.mxu0 0
          %653 = vmatpush1.bf16.msra.mxu0 0
          %654 = vmatprep.subr.bf16.mxu0 0
          %655 = vmatpush1.bf16.msra.mxu0 0
          %656 = vmatprep.subr.bf16.mxu0 0
          %657 = vmatpush1.bf16.msra.mxu0 0
          %658 = vmatprep.subr.bf16.mxu0 0
          %659 = vmatpush1.bf16.msra.mxu0 0
          %660 = vmatprep.subr.bf16.mxu0 0
          %661 = vmatpush1.bf16.msra.mxu0 0
          %662 = vmatprep.subr.bf16.mxu0 0
          %663 = vmatpush1.bf16.msra.mxu0 0
          %664 = vmatprep.mubr.bf16.mxu0 0
          %665 = vmatmul.mubr.bf16.gmra.mrb[0].mxu0 %v560
          %v666 = vpop.f32.mrb[0].mxu0
          %v667 = vadd.f32 %v582, %v666
          %v668 = vpop.f32.mrb[0].mxu0
          %v669 = vpop.f32.mrb[0].mxu0
          %v670 = vadd.f32 %v582, %v669
          %v671 = vpop.f32.mrb[0].mxu0
          %672 = vdwg.mxu0
          %673 = vst [vmem:[%s292] sm:$0xff] %v667
          %674 = vst [vmem:[%s292 + $0x8] sm:$0xff] %v670
        $region68: #{tpu_custom_call.1} parent=39 // pred_fallthru
          _
        %s675 = sand.u32 %s159, 1
        %s676 = scalar_lea.sflag [#allocation7], %s675
        %s677 = sand.u32 %s159, 1
        %s678 = smul.addr %s677, 16
        %s679 = scalar_lea.vmem [#allocation11], %s678
        // Predicated region
        $region69: #{tpu_custom_call.1} parent=39 // pred_check
          %p680 = pneg %p169
        $region70: #{tpu_custom_call.1} parent=39 // pred_check_branch
          %682 = sbr.rel (%p680) target = $region72
        $region71: #{tpu_custom_call.1} parent=39 // pred_region
          %s683 = smul.u32 %s28, %s27
          %s684 = smul.u32 2, %s683
          %s686 = ssub.s32 256, 256
          %687 = vsyncadd %s676, %s686
          %s688 = smul.addr %s684, 128
          %s689 = scalar_lea.hbm %s5, %s688
          %s690 = sshll.u32 %s679, 4
          %s691 = int_to_ptr.vmem [resolvable:$true] %s690
          %696 = dma.vmem_to_hbm [thread:$0]  %s691, 256, %s689, %s676, 128, 128, 8
        $region72: #{tpu_custom_call.1} parent=39 // pred_fallthru
          _
      $region40: #{tpu_custom_call.1} parent=5 // pred_fallthru
        _
      %p697 = scmp.le.s32.totalorder 2, %s18
      // Predicated region
      $region73: #{tpu_custom_call.1} parent=5 // pred_check
        %p698 = pneg %p697
      $region74: #{tpu_custom_call.1} parent=5 // pred_check_branch
        %700 = sbr.rel (%p698) target = $region76
      $region75: #{tpu_custom_call.1} parent=5 // pred_region
        %s701 = ssub.s32 %s18, 2
        // Predicated region
        $region77: #{tpu_custom_call.1} parent=75 // pred_check
          %p702 = pneg %p175
        $region78: #{tpu_custom_call.1} parent=75 // pred_check_branch
          %704 = sbr.rel (%p702) target = $region80
        $region79: #{tpu_custom_call.1} parent=75 // pred_region
          %s705 = sand.u32 %s160, 1
          %s706 = scalar_lea.sflag [#allocation7], %s705
          %s707 = sand.u32 %s160, 1
          %s708 = smul.addr %s707, 16
          %s709 = scalar_lea.vmem [#allocation11], %s708
          %710 = dma.done %s706, 256
        $region80: #{tpu_custom_call.1} parent=75 // pred_fallthru
          _
      $region76: #{tpu_custom_call.1} parent=5 // pred_fallthru
        _
    $region6: #{tpu_custom_call.1} parent=1 // loop_footer
      %s22 = sadd.s32 1, %s18
    $region7: #{tpu_custom_call.1} parent=1 // loop_footer_branch
      %17 = sbr.rel target = $region3
    $region8: #{tpu_custom_call.1} parent=1 // loop_exit
      _
    %711 = vsyncpa [#allocation6], 1
    %s712 = scalar_lea.sflag [#allocation6], 1
    %713 = vsyncpa %s712, 1
    %714 = vsyncpa [#allocation9], 1
    %715 = vsyncpa [#allocation7], 1
    %s716 = scalar_lea.sflag [#allocation7], 1
    %717 = vsyncpa %s716, 1

</llo_original>
